<compile_context>
chip_gen: v5e
topology: v5e:2x2
jax: 0.10.0
libtpu: 0.0.40
codegen_flags: <defaults>
</compile_context>

<pallas_src>
import functools

import jax
import jax.numpy as jnp
from jax.experimental import pallas as pl
from jax.experimental.pallas import tpu as pltpu


def _round_up(x: int, m: int) -> int:
    return (x + m - 1) // m * m


def _vmem_capacity_bytes() -> int:
    """Physical VMEM of the local chip; conservative 64 MiB (v7x) fallback."""
    try:
        info = pltpu.get_tpu_info()
        for name in ("vmem_capacity_bytes", "vmem_bytes", "vmem_size_bytes"):
            v = getattr(info, name, None)
            if v:
                return int(v)
    except Exception:
        pass
    return 64 * 2**20


def klgcn_kernel(vnbu_ref, unbi_ref, rel_ref, ent_ref, u_ref, v_ref,
                 wt_ref, b_ref, sel_d_ref, sel_k_ref, exp_k_ref, out_ref):
    # vnbu_ref / unbi_ref / rel_ref / ent_ref : (TB, K*D)  lane-dense, io dtype
    # u_ref / v_ref                           : (TB, D)    io dtype
    # wt_ref                                  : (D, D)     W^T, io dtype
    # b_ref                                   : (1, D)     f32
    # sel_d_ref : (K*D, D) f32   sum over K keeping D    (sel[k*D+d, d] = 1)
    # sel_k_ref : (K*D, K) f32   sum over D keeping K    (sel[k*D+d, k] = 1)
    # exp_k_ref : (K, K*D) f32   repeat each k D times   (exp[k, k*D+d] = 1)
    # out_ref   : (1, TB)  f32   lane-dense score row
    f32 = jnp.float32
    K = exp_k_ref.shape[0]
    D = sel_d_ref.shape[1]
    inv_k = f32(1.0 / K)

    ue = u_ref[...].astype(f32)                                     # (TB, D)
    ve = v_ref[...].astype(f32)                                     # (TB, D)

    # "lite" embeddings: sum over the K sampled interaction neighbors, done as
    # MXU selection matmuls on the lane-dense flat tensors (1/K applied later).
    lite_user = jnp.dot(vnbu_ref[...].astype(f32), sel_d_ref[...],
                        preferred_element_type=f32)                 # (TB, D)
    lite_item = jnp.dot(unbi_ref[...].astype(f32), sel_d_ref[...],
                        preferred_element_type=f32)                 # (TB, D)

    # user-relation attention scores over the K KG neighbors:
    #   scores[b, k] = sum_d rel[b, k, d] * ue[b, d]
    ue_tiled = jnp.concatenate([ue] * K, axis=-1)                   # (TB, K*D)
    t = rel_ref[...].astype(f32) * ue_tiled                         # (TB, K*D)
    scores = jnp.dot(t, sel_k_ref[...], preferred_element_type=f32)  # (TB, K)
    scores = scores - jnp.max(scores, axis=-1, keepdims=True)
    p = jnp.exp(scores)
    p = p * pl.reciprocal(jnp.sum(p, axis=-1, keepdims=True), approx=True)

    # neighbor aggregation: agg[b, d] = sum_k p[b, k] * ent[b, k, d]
    p_exp = jnp.dot(p, exp_k_ref[...], preferred_element_type=f32)   # (TB, K*D)
    agg = jnp.dot(ent_ref[...].astype(f32) * p_exp, sel_d_ref[...],
                  preferred_element_type=f32)                        # (TB, D)

    # 'sum' aggregator: tanh((self + neighbors) @ W^T + b).
    # Cast LHS to the weight dtype (bf16 in the default io mode -> bf16 MXU
    # operands, f32 accumulate; no-op for the f32 io mode).
    lhs = (ve + agg).astype(wt_ref.dtype)
    h = jnp.dot(lhs, wt_ref[...], preferred_element_type=f32)        # (TB, D)
    item_emb = jnp.tanh(h + b_ref[...])

    # score = sigmoid( (0.5*lite_user + 0.5*ue) . (0.5*lite_item + 0.5*item) )
    # with the 0.5*0.5 folded into a single 0.25 factor.
    user2 = lite_user * inv_k + ue
    item2 = lite_item * inv_k + item_emb
    s = 0.25 * jnp.sum(user2 * item2, axis=-1)                       # (TB,)
    out_ref[...] = jax.nn.sigmoid(s)[None, :]                        # (1, TB)


@functools.partial(jax.jit, static_argnames=("tb", "io_dtype"))
def klgcn_forward(u_idx, v_idx, params, adj_ent, adj_rel,
                  uandi_tab, iandu_tab, *, tb=2048, io_dtype=jnp.bfloat16):
    usr, ent, rel = params["usr"], params["ent"], params["rel"]
    W, bias = params["W"], params["b"]
    B = u_idx.shape[0]
    K = adj_ent.shape[1]
    D = usr.shape[1]
    kd = K * D

    # ---- VMEM-aware batch-tile sizing (feedback: count lane padding + f32 temps).
    io_size = jnp.dtype(io_dtype).itemsize
    kd_pad = _round_up(kd, 128)          # big flat blocks (usually already dense)
    d_pad = _round_up(D, 128)            # narrow (tb, D) blocks pad lanes to 128
    row_in = 2 * (4 * kd_pad + 2 * d_pad) * io_size     # double-buffered inputs
    row_tmp = (4 * kd_pad + 8 * d_pad) * 4              # live f32 temporaries (conservative)
    row_out = 2 * 8 * 4                                 # (1, tb) f32 out, 2 bufs, 8-sublane pad
    per_row = row_in + row_tmp + row_out
    fixed = 4 * 2**20                    # weights, selection mats, sems, compiler scratch

    budget = int(0.7 * _vmem_capacity_bytes())          # ~45 MiB on v7x, ~89 MiB on v5e/v6e
    tb_budget = max(8, ((budget - fixed) // per_row) // 8 * 8)
    tb_eff = max(8, min(tb, tb_budget, _round_up(B, 8)) // 8 * 8)
    # Keep >= 2 grid steps when the batch allows it (v7x megacore sharding).
    if _round_up(B, 8) <= tb_eff and tb_eff >= 512:
        tb_eff = _round_up((tb_eff + 1) // 2, 8)

    b_pad = _round_up(B, tb_eff)
    if b_pad != B:
        pad = b_pad - B
        u_idx = jnp.concatenate([u_idx, jnp.zeros((pad,), u_idx.dtype)])
        v_idx = jnp.concatenate([v_idx, jnp.zeros((pad,), v_idx.dtype)])

    # ---- glue: data-dependent embedding gathers (plain JAX).
    # Tables are cast to io_dtype FIRST so the gathers read and write half the
    # bytes in the default bf16 mode.
    # TODO(synk): fuse these gathers into the kernel (scalar prefetch + in-kernel
    # gather / manual DMA) to avoid the HBM round-trip of the (B, K*D) tensors.
    usr_g = usr.astype(io_dtype)
    ent_g = ent.astype(io_dtype)
    rel_g = rel.astype(io_dtype)
    user_neighbor = uandi_tab[u_idx]                      # (B, K) entity ids (UAndI)
    item_neighbor = iandu_tab[v_idx]                      # (B, K) user ids   (iAndU)
    v_nb_user = usr_g[item_neighbor].reshape(b_pad, kd)   # -> lite_user
    u_nb_item = ent_g[user_neighbor].reshape(b_pad, kd)   # -> lite_item
    u_emb = usr_g[u_idx]                                  # (B, D)
    v_emb = ent_g[v_idx]                                  # (B, D) == item_embeddings_original
    kg_rel = rel_g[adj_rel[v_idx]].reshape(b_pad, kd)     # KG neighbor relations
    kg_ent = ent_g[adj_ent[v_idx]].reshape(b_pad, kd)     # KG neighbor entities
    wt = W.T.astype(io_dtype)                             # (D, D): nn.Linear stores (out, in)
    b2 = bias.reshape(1, D).astype(jnp.float32)

    # Constant 0/1 selection matrices (constant-folded by XLA).
    eye_d = jnp.eye(D, dtype=jnp.float32)
    eye_k = jnp.eye(K, dtype=jnp.float32)
    sel_d = jnp.tile(eye_d, (K, 1))                       # (K*D, D): sum over K keep D
    sel_k = jnp.repeat(eye_k, D, axis=0)                  # (K*D, K): sum over D keep K
    exp_k = sel_k.T                                       # (K, K*D): repeat k over D

    grid = (b_pad // tb_eff,)
    big = pl.BlockSpec((tb_eff, kd), lambda i: (i, 0))
    small = pl.BlockSpec((tb_eff, D), lambda i: (i, 0))

    def rep(shape):
        return pl.BlockSpec(shape, lambda i: (0, 0))      # replicated (re-DMA skipped)

    vmem_limit = int(min(budget, max(16 * 2**20, fixed + per_row * tb_eff)))

    out = pl.pallas_call(
        klgcn_kernel,
        out_shape=jax.ShapeDtypeStruct((1, b_pad), jnp.float32),
        grid_spec=pltpu.PrefetchScalarGridSpec(
            num_scalar_prefetch=0,
            grid=grid,
            in_specs=[
                big,                 # v_nb_user (B, K*D)
                big,                 # u_nb_item (B, K*D)
                big,                 # kg_rel    (B, K*D)
                big,                 # kg_ent    (B, K*D)
                small,               # u_emb     (B, D)
                small,               # v_emb     (B, D)
                rep((D, D)),         # W^T
                rep((1, D)),         # bias
                rep((kd, D)),        # sel_d
                rep((kd, K)),        # sel_k
                rep((K, kd)),        # exp_k
            ],
            out_specs=pl.BlockSpec((1, tb_eff), lambda i: (0, i)),
        ),
        compiler_params=pltpu.CompilerParams(
            dimension_semantics=("parallel",),
            vmem_limit_bytes=vmem_limit),
    )(v_nb_user, u_nb_item, kg_rel, kg_ent, u_emb, v_emb,
      wt, b2, sel_d, sel_k, exp_k)
    return out[0, :B]


def klgcn_reference(u_idx, v_idx, params, adj_ent, adj_rel, uandi_tab, iandu_tab):
    """Pure-JAX reference mirroring the PyTorch forward."""
    usr, ent, rel = params["usr"], params["ent"], params["rel"]
    W, bias = params["W"], params["b"]
    lite_user = jnp.mean(usr[iandu_tab[v_idx]], axis=1)
    lite_item = jnp.mean(ent[uandi_tab[u_idx]], axis=1)
    u_emb = usr[u_idx]
    v_emb = ent[v_idx]
    nb_ent = ent[adj_ent[v_idx]]
    nb_rel = rel[adj_rel[v_idx]]
    scores = jnp.einsum("bd,bkd->bk", u_emb, nb_rel)
    p = jax.nn.softmax(scores, axis=-1)
    agg = jnp.einsum("bk,bkd->bd", p, nb_ent)
    item_emb = jnp.tanh((v_emb + agg) @ W.T + bias)
    user_final = 0.5 * lite_user + 0.5 * u_emb
    item_final = 0.5 * lite_item + 0.5 * item_emb
    return jax.nn.sigmoid(jnp.sum(user_final * item_final, axis=-1))


if __name__ == "__main__":
    num_user, num_ent, num_rel = 20, 30, 5
    D, K = 32, 8

    key = jax.random.PRNGKey(0)
    ks = jax.random.split(key, 10)
    params = {
        "usr": jax.random.normal(ks[0], (num_user, D), jnp.float32) * 0.1,
        "ent": jax.random.normal(ks[1], (num_ent, D), jnp.float32) * 0.1,
        "rel": jax.random.normal(ks[2], (num_rel, D), jnp.float32) * 0.1,
        "W": jax.random.normal(ks[3], (D, D), jnp.float32) * 0.1,
        "b": jax.random.normal(ks[4], (D,), jnp.float32) * 0.1,
    }
    adj_ent = jax.random.randint(ks[5], (num_ent, K), 0, num_ent, jnp.int32)
    adj_rel = jax.random.randint(ks[6], (num_ent, K), 0, num_rel, jnp.int32)
    # UAndI: user -> K entity (item) ids ; iAndU: item -> K user ids
    uandi_tab = jax.random.randint(ks[7], (num_user, K), 0, num_ent, jnp.int32)
    iandu_tab = jax.random.randint(ks[8], (num_ent, K), 0, num_user, jnp.int32)

    def run_case(batch, io_dtype, tol, tb=2048):
        u_idx = jax.random.randint(jax.random.fold_in(key, batch),
                                   (batch,), 0, num_user, jnp.int32)
        v_idx = jax.random.randint(jax.random.fold_in(key, batch + 100),
                                   (batch,), 0, num_ent, jnp.int32)
        out = klgcn_forward(u_idx, v_idx, params, adj_ent, adj_rel,
                            uandi_tab, iandu_tab, tb=tb, io_dtype=io_dtype)
        out = jax.block_until_ready(out)
        ref = klgcn_reference(u_idx, v_idx, params, adj_ent, adj_rel,
                              uandi_tab, iandu_tab)
        assert out.shape == (batch,), out.shape
        assert jnp.allclose(out, ref, atol=tol, rtol=tol), (io_dtype, batch, out, ref)

    run_case(16, jnp.float32, 3e-3)              # f32 I/O path, single tile
    run_case(13, jnp.float32, 3e-3)              # batch not a multiple of 8 (padding path)
    run_case(16, jnp.bfloat16, 3e-2)             # bf16 I/O path (default perf mode)
    run_case(1040, jnp.bfloat16, 3e-2, tb=512)   # multi-step grid + tail padding
    print("KERNEL_OK")
</pallas_src>

<mosaic_0001>
module attributes {stable_mosaic.version = 11 : i64} {
  func.func @klgcn_kernel(%arg0: i32, %arg1: memref<16x256xf32, #tpu.memory_space<vmem>>, %arg2: memref<16x256xf32, #tpu.memory_space<vmem>>, %arg3: memref<16x256xf32, #tpu.memory_space<vmem>>, %arg4: memref<16x256xf32, #tpu.memory_space<vmem>>, %arg5: memref<16x32xf32, #tpu.memory_space<vmem>>, %arg6: memref<16x32xf32, #tpu.memory_space<vmem>>, %arg7: memref<32x32xf32, #tpu.memory_space<vmem>>, %arg8: memref<1x32xf32, #tpu.memory_space<vmem>>, %arg9: memref<256x32xf32, #tpu.memory_space<vmem>>, %arg10: memref<256x8xf32, #tpu.memory_space<vmem>>, %arg11: memref<8x256xf32, #tpu.memory_space<vmem>>, %arg12: memref<1x16xf32, #tpu.memory_space<vmem>>) attributes {dimension_semantics = [#tpu.dimension_semantics<parallel>], iteration_bounds = array<i64: 1>, scalar_prefetch = 0 : i64, scratch_operands = 0 : i64, tpu.core_type = #tpu.core_type<tc>, window_params = [{transform_indices = @transform_0, window_bounds = array<i64: 16, 256>}, {transform_indices = @transform_1, window_bounds = array<i64: 16, 256>}, {transform_indices = @transform_2, window_bounds = array<i64: 16, 256>}, {transform_indices = @transform_3, window_bounds = array<i64: 16, 256>}, {transform_indices = @transform_4, window_bounds = array<i64: 16, 32>}, {transform_indices = @transform_5, window_bounds = array<i64: 16, 32>}, {pipeline_mode = #tpu.pipeline_mode<synchronous>, transform_indices = @transform_6, window_bounds = array<i64: 32, 32>}, {pipeline_mode = #tpu.pipeline_mode<synchronous>, transform_indices = @transform_7, window_bounds = array<i64: 1, 32>}, {pipeline_mode = #tpu.pipeline_mode<synchronous>, transform_indices = @transform_8, window_bounds = array<i64: 256, 32>}, {pipeline_mode = #tpu.pipeline_mode<synchronous>, transform_indices = @transform_9, window_bounds = array<i64: 256, 8>}, {pipeline_mode = #tpu.pipeline_mode<synchronous>, transform_indices = @transform_10, window_bounds = array<i64: 8, 256>}, {transform_indices = @transform_11, window_bounds = array<i64: 1, 16>}]} {
    %c0 = arith.constant 0 : index
    %c0_0 = arith.constant 0 : index
    %0 = vector.load %arg5[%c0, %c0_0] : memref<16x32xf32, #tpu.memory_space<vmem>>, vector<16x32xf32>
    %c0_1 = arith.constant 0 : index
    %c0_2 = arith.constant 0 : index
    %1 = vector.load %arg6[%c0_1, %c0_2] : memref<16x32xf32, #tpu.memory_space<vmem>>, vector<16x32xf32>
    %c0_3 = arith.constant 0 : index
    %c0_4 = arith.constant 0 : index
    %2 = vector.load %arg1[%c0_3, %c0_4] : memref<16x256xf32, #tpu.memory_space<vmem>>, vector<16x256xf32>
    %c0_5 = arith.constant 0 : index
    %c0_6 = arith.constant 0 : index
    %3 = vector.load %arg9[%c0_5, %c0_6] : memref<256x32xf32, #tpu.memory_space<vmem>>, vector<256x32xf32>
    %cst = arith.constant dense<0.000000e+00> : vector<16x32xf32>
    %4 = tpu.matmul %2, %3, %cst {dimension_numbers = #tpu.dot_dimension_numbers<[1], [0], [0], [1], [0, 0, 1, 1], [], []>} : vector<16x256xf32>, vector<256x32xf32>, vector<16x32xf32> -> vector<16x32xf32>
    %c0_7 = arith.constant 0 : index
    %c0_8 = arith.constant 0 : index
    %5 = vector.load %arg2[%c0_7, %c0_8] : memref<16x256xf32, #tpu.memory_space<vmem>>, vector<16x256xf32>
    %c0_9 = arith.constant 0 : index
    %c0_10 = arith.constant 0 : index
    %6 = vector.load %arg9[%c0_9, %c0_10] : memref<256x32xf32, #tpu.memory_space<vmem>>, vector<256x32xf32>
    %cst_11 = arith.constant dense<0.000000e+00> : vector<16x32xf32>
    %7 = tpu.matmul %5, %6, %cst_11 {dimension_numbers = #tpu.dot_dimension_numbers<[1], [0], [0], [1], [0, 0, 1, 1], [], []>} : vector<16x256xf32>, vector<256x32xf32>, vector<16x32xf32> -> vector<16x32xf32>
    %8 = tpu.concatenate %0, %0, %0, %0, %0, %0, %0, %0 in 1 : vector<16x32xf32>, vector<16x32xf32>, vector<16x32xf32>, vector<16x32xf32>, vector<16x32xf32>, vector<16x32xf32>, vector<16x32xf32>, vector<16x32xf32> -> vector<16x256xf32>
    %c0_12 = arith.constant 0 : index
    %c0_13 = arith.constant 0 : index
    %9 = vector.load %arg3[%c0_12, %c0_13] : memref<16x256xf32, #tpu.memory_space<vmem>>, vector<16x256xf32>
    %10 = arith.mulf %9, %8 : vector<16x256xf32>
    %c0_14 = arith.constant 0 : index
    %c0_15 = arith.constant 0 : index
    %11 = vector.load %arg10[%c0_14, %c0_15] : memref<256x8xf32, #tpu.memory_space<vmem>>, vector<256x8xf32>
    %cst_16 = arith.constant dense<0.000000e+00> : vector<16x8xf32>
    %12 = tpu.matmul %10, %11, %cst_16 {dimension_numbers = #tpu.dot_dimension_numbers<[1], [0], [0], [1], [0, 0, 1, 1], [], []>} : vector<16x256xf32>, vector<256x8xf32>, vector<16x8xf32> -> vector<16x8xf32>
    %cst_17 = arith.constant dense<0xFF800000> : vector<16xf32>
    %13 = vector.multi_reduction <maximumf>, %12, %cst_17 [1] : vector<16x8xf32> to vector<16xf32>
    %14 = vector.shape_cast %13 : vector<16xf32> to vector<16x1xf32>
    %15 = vector.broadcast %14 : vector<16x1xf32> to vector<16x8xf32>
    %16 = arith.subf %12, %15 : vector<16x8xf32>
    %17 = math.exp %16 : vector<16x8xf32>
    %cst_18 = arith.constant dense<0.000000e+00> : vector<16xf32>
    %18 = vector.multi_reduction <add>, %17, %cst_18 [1] : vector<16x8xf32> to vector<16xf32>
    %19 = vector.shape_cast %18 : vector<16xf32> to vector<16x1xf32>
    %20 = tpu.reciprocal %19 {approx = true} : vector<16x1xf32> -> vector<16x1xf32>
    %21 = vector.broadcast %20 : vector<16x1xf32> to vector<16x8xf32>
    %22 = arith.mulf %17, %21 : vector<16x8xf32>
    %c0_19 = arith.constant 0 : index
    %c0_20 = arith.constant 0 : index
    %23 = vector.load %arg11[%c0_19, %c0_20] : memref<8x256xf32, #tpu.memory_space<vmem>>, vector<8x256xf32>
    %cst_21 = arith.constant dense<0.000000e+00> : vector<16x256xf32>
    %24 = tpu.matmul %22, %23, %cst_21 {dimension_numbers = #tpu.dot_dimension_numbers<[1], [0], [0], [1], [0, 0, 1, 1], [], []>} : vector<16x8xf32>, vector<8x256xf32>, vector<16x256xf32> -> vector<16x256xf32>
    %c0_22 = arith.constant 0 : index
    %c0_23 = arith.constant 0 : index
    %25 = vector.load %arg4[%c0_22, %c0_23] : memref<16x256xf32, #tpu.memory_space<vmem>>, vector<16x256xf32>
    %26 = arith.mulf %25, %24 : vector<16x256xf32>
    %c0_24 = arith.constant 0 : index
    %c0_25 = arith.constant 0 : index
    %27 = vector.load %arg9[%c0_24, %c0_25] : memref<256x32xf32, #tpu.memory_space<vmem>>, vector<256x32xf32>
    %cst_26 = arith.constant dense<0.000000e+00> : vector<16x32xf32>
    %28 = tpu.matmul %26, %27, %cst_26 {dimension_numbers = #tpu.dot_dimension_numbers<[1], [0], [0], [1], [0, 0, 1, 1], [], []>} : vector<16x256xf32>, vector<256x32xf32>, vector<16x32xf32> -> vector<16x32xf32>
    %29 = arith.addf %1, %28 : vector<16x32xf32>
    %c0_27 = arith.constant 0 : index
    %c0_28 = arith.constant 0 : index
    %30 = vector.load %arg7[%c0_27, %c0_28] : memref<32x32xf32, #tpu.memory_space<vmem>>, vector<32x32xf32>
    %cst_29 = arith.constant dense<0.000000e+00> : vector<16x32xf32>
    %31 = tpu.matmul %29, %30, %cst_29 {dimension_numbers = #tpu.dot_dimension_numbers<[1], [0], [0], [1], [0, 0, 1, 1], [], []>} : vector<16x32xf32>, vector<32x32xf32>, vector<16x32xf32> -> vector<16x32xf32>
    %c0_30 = arith.constant 0 : index
    %c0_31 = arith.constant 0 : index
    %32 = vector.load %arg8[%c0_30, %c0_31] : memref<1x32xf32, #tpu.memory_space<vmem>>, vector<1x32xf32>
    %33 = vector.broadcast %32 : vector<1x32xf32> to vector<16x32xf32>
    %34 = arith.addf %31, %33 : vector<16x32xf32>
    %35 = math.tanh %34 : vector<16x32xf32>
    %cst_32 = arith.constant 1.250000e-01 : f32
    %36 = vector.broadcast %cst_32 : f32 to vector<16x32xf32>
    %37 = arith.mulf %4, %36 : vector<16x32xf32>
    %38 = arith.addf %37, %0 : vector<16x32xf32>
    %cst_33 = arith.constant 1.250000e-01 : f32
    %39 = vector.broadcast %cst_33 : f32 to vector<16x32xf32>
    %40 = arith.mulf %7, %39 : vector<16x32xf32>
    %41 = arith.addf %40, %35 : vector<16x32xf32>
    %42 = arith.mulf %38, %41 : vector<16x32xf32>
    %cst_34 = arith.constant dense<0.000000e+00> : vector<16xf32>
    %43 = vector.multi_reduction <add>, %42, %cst_34 [1] : vector<16x32xf32> to vector<16xf32>
    %cst_35 = arith.constant 2.500000e-01 : f32
    %44 = vector.broadcast %cst_35 : f32 to vector<16xf32>
    %45 = arith.mulf %44, %43 : vector<16xf32>
    %46 = arith.negf %45 : vector<16xf32>
    %47 = math.exp %46 : vector<16xf32>
    %cst_36 = arith.constant 1.000000e+00 : f32
    %48 = vector.broadcast %cst_36 : f32 to vector<16xf32>
    %49 = arith.addf %48, %47 : vector<16xf32>
    %50 = arith.divf %48, %49 : vector<16xf32>
    %51 = vector.shape_cast %50 : vector<16xf32> to vector<1x16xf32>
    %c0_37 = arith.constant 0 : index
    %c0_38 = arith.constant 0 : index
    %52 = vector.load %arg12[%c0_37, %c0_38] : memref<1x16xf32, #tpu.memory_space<vmem>>, vector<1x16xf32>
    tpu.vector_store %arg12[%c0_37, %c0_38], %51 {strides = array<i32>} : memref<1x16xf32, #tpu.memory_space<vmem>>, vector<1x16xf32>,
    return
  }
  func.func @transform_0(%arg0: i32) -> (i32, i32) {
    %c0_i32 = arith.constant 0 : i32
    %c0_i32_0 = arith.constant 0 : i32
    return %arg0, %c0_i32 : i32, i32
  }
  func.func @transform_1(%arg0: i32) -> (i32, i32) {
    %c0_i32 = arith.constant 0 : i32
    %c0_i32_0 = arith.constant 0 : i32
    return %arg0, %c0_i32 : i32, i32
  }
  func.func @transform_2(%arg0: i32) -> (i32, i32) {
    %c0_i32 = arith.constant 0 : i32
    %c0_i32_0 = arith.constant 0 : i32
    return %arg0, %c0_i32 : i32, i32
  }
  func.func @transform_3(%arg0: i32) -> (i32, i32) {
    %c0_i32 = arith.constant 0 : i32
    %c0_i32_0 = arith.constant 0 : i32
    return %arg0, %c0_i32 : i32, i32
  }
  func.func @transform_4(%arg0: i32) -> (i32, i32) {
    %c0_i32 = arith.constant 0 : i32
    %c0_i32_0 = arith.constant 0 : i32
    return %arg0, %c0_i32 : i32, i32
  }
  func.func @transform_5(%arg0: i32) -> (i32, i32) {
    %c0_i32 = arith.constant 0 : i32
    %c0_i32_0 = arith.constant 0 : i32
    return %arg0, %c0_i32 : i32, i32
  }
  func.func @transform_6(%arg0: i32) -> (i32, i32) {
    %c0_i32 = arith.constant 0 : i32
    %c0_i32_0 = arith.constant 0 : i32
    %c0_i32_1 = arith.constant 0 : i32
    return %c0_i32, %c0_i32_0 : i32, i32
  }
  func.func @transform_7(%arg0: i32) -> (i32, i32) {
    %c0_i32 = arith.constant 0 : i32
    %c0_i32_0 = arith.constant 0 : i32
    %c0_i32_1 = arith.constant 0 : i32
    return %c0_i32, %c0_i32_0 : i32, i32
  }
  func.func @transform_8(%arg0: i32) -> (i32, i32) {
    %c0_i32 = arith.constant 0 : i32
    %c0_i32_0 = arith.constant 0 : i32
    %c0_i32_1 = arith.constant 0 : i32
    return %c0_i32, %c0_i32_0 : i32, i32
  }
  func.func @transform_9(%arg0: i32) -> (i32, i32) {
    %c0_i32 = arith.constant 0 : i32
    %c0_i32_0 = arith.constant 0 : i32
    %c0_i32_1 = arith.constant 0 : i32
    return %c0_i32, %c0_i32_0 : i32, i32
  }
  func.func @transform_10(%arg0: i32) -> (i32, i32) {
    %c0_i32 = arith.constant 0 : i32
    %c0_i32_0 = arith.constant 0 : i32
    %c0_i32_1 = arith.constant 0 : i32
    return %c0_i32, %c0_i32_0 : i32, i32
  }
  func.func @transform_11(%arg0: i32) -> (i32, i32) {
    %c0_i32 = arith.constant 0 : i32
    %c0_i32_0 = arith.constant 0 : i32
    return %c0_i32, %arg0 : i32, i32
  }
}

</mosaic_0001>

<llo_original>
// kernel: klgcn_forward.1
$region0: #{klgcn_forward.1}
  #allocation0 [shape = 'u32[]', space=smem, size = 0x4, offset = 0x4, fixed_abs, tag = 'smem constant byte address 0x4 - core index']
  #allocation1 [shape = 'u32[72,128]{1,0:T(1,128)}', space=vmem, size = 0x9000, scoped, tag = 'internal scratch']
  %s0 = inlined_call_operand.vmem [shape: f32[16,256], index: 0, kind: input, shape index: {}]
  %s1 = inlined_call_operand.vmem [shape: f32[16,256], index: 1, kind: input, shape index: {}]
  %s2 = inlined_call_operand.vmem [shape: f32[16,256], index: 2, kind: input, shape index: {}]
  %s3 = inlined_call_operand.vmem [shape: f32[16,256], index: 3, kind: input, shape index: {}]
  %s4 = inlined_call_operand.vmem [shape: f32[16,32], index: 4, kind: input, shape index: {}]
  %s5 = inlined_call_operand.vmem [shape: f32[16,32], index: 5, kind: input, shape index: {}]
  %s6 = inlined_call_operand.vmem [shape: f32[32,32], index: 6, kind: input, shape index: {}]
  %s7 = inlined_call_operand.vmem [shape: f32[1,32], index: 7, kind: input, shape index: {}]
  %s8 = inlined_call_operand.vmem [shape: f32[256,32], index: 8, kind: input, shape index: {}]
  %s9 = inlined_call_operand.vmem [shape: f32[256,8], index: 9, kind: input, shape index: {}]
  %s10 = inlined_call_operand.vmem [shape: f32[8,256], index: 10, kind: input, shape index: {}]
  %s11 = inlined_call_operand.hbm [shape: f32[1,16], index: 11, kind: output, shape index: {}]
  %s12 = sld [smem:[#allocation0]]
  $region54: #{klgcn_forward.1} parent=0
    _
  %s14 = ssub.s32 1, %s12
  %s15 = scalar_select 0, %s14, %s12
  $region1: #{klgcn_forward.1} parent=0
    #allocation2 [shape = 'u8[512]{0}', space=vmem, size = 0x400, scoped, tag = 'output window, operand 0, single buffered']
    #allocation3 [shape = 's32[1]{0}', space=sflag, size = 0x4, scoped, tag = 'scoped memory for klgcn_forward.1']
    %16 = vsyncpa [#allocation3], 0
    // Predicated region
    $region2: #{klgcn_forward.1} parent=1 // pred_check
      _
    $region3: #{klgcn_forward.1} parent=1 // pred_check_branch
      %18 = sbr.rel (0) target = $region5
    $region4: #{klgcn_forward.1} parent=1 // pred_region
      _
    $region5: #{klgcn_forward.1} parent=1 // pred_fallthru
      _
    // Predicated region
    $region6: #{klgcn_forward.1} parent=1 // pred_check
      _
    $region7: #{klgcn_forward.1} parent=1 // pred_check_branch
      %20 = sbr.rel (0) target = $region9
    $region8: #{klgcn_forward.1} parent=1 // pred_region
      _
    $region9: #{klgcn_forward.1} parent=1 // pred_fallthru
      _
    // Predicated region
    $region10: #{klgcn_forward.1} parent=1 // pred_check
      _
    $region11: #{klgcn_forward.1} parent=1 // pred_check_branch
      %22 = sbr.rel (0) target = $region13
    $region12: #{klgcn_forward.1} parent=1 // pred_region
      _
    $region13: #{klgcn_forward.1} parent=1 // pred_fallthru
      _
    // Predicated region
    $region14: #{klgcn_forward.1} parent=1 // pred_check
      _
    $region15: #{klgcn_forward.1} parent=1 // pred_check_branch
      %24 = sbr.rel (0) target = $region17
    $region16: #{klgcn_forward.1} parent=1 // pred_region
      _
    $region17: #{klgcn_forward.1} parent=1 // pred_fallthru
      _
    // Predicated region
    $region18: #{klgcn_forward.1} parent=1 // pred_check
      _
    $region19: #{klgcn_forward.1} parent=1 // pred_check_branch
      %26 = sbr.rel (0) target = $region21
    $region20: #{klgcn_forward.1} parent=1 // pred_region
      _
    $region21: #{klgcn_forward.1} parent=1 // pred_fallthru
      _
    // Predicated region
    $region22: #{klgcn_forward.1} parent=1 // pred_check
      _
    $region23: #{klgcn_forward.1} parent=1 // pred_check_branch
      %28 = sbr.rel (0) target = $region25
    $region24: #{klgcn_forward.1} parent=1 // pred_region
      _
    $region25: #{klgcn_forward.1} parent=1 // pred_fallthru
      _
    // Predicated region
    $region26: #{klgcn_forward.1} parent=1 // pred_check
      _
    $region27: #{klgcn_forward.1} parent=1 // pred_check_branch
      %30 = sbr.rel (0) target = $region29
    $region28: #{klgcn_forward.1} parent=1 // pred_region
      _
    $region29: #{klgcn_forward.1} parent=1 // pred_fallthru
      _
    // Predicated region
    $region30: #{klgcn_forward.1} parent=1 // pred_check
      _
    $region31: #{klgcn_forward.1} parent=1 // pred_check_branch
      %32 = sbr.rel (0) target = $region33
    $region32: #{klgcn_forward.1} parent=1 // pred_region
      _
    $region33: #{klgcn_forward.1} parent=1 // pred_fallthru
      _
    // Predicated region
    $region34: #{klgcn_forward.1} parent=1 // pred_check
      _
    $region35: #{klgcn_forward.1} parent=1 // pred_check_branch
      %34 = sbr.rel (0) target = $region37
    $region36: #{klgcn_forward.1} parent=1 // pred_region
      _
    $region37: #{klgcn_forward.1} parent=1 // pred_fallthru
      _
    // Predicated region
    $region38: #{klgcn_forward.1} parent=1 // pred_check
      _
    $region39: #{klgcn_forward.1} parent=1 // pred_check_branch
      %36 = sbr.rel (0) target = $region41
    $region40: #{klgcn_forward.1} parent=1 // pred_region
      _
    $region41: #{klgcn_forward.1} parent=1 // pred_fallthru
      _
    // Predicated region
    $region42: #{klgcn_forward.1} parent=1 // pred_check
      _
    $region43: #{klgcn_forward.1} parent=1 // pred_check_branch
      %38 = sbr.rel (0) target = $region45
    $region44: #{klgcn_forward.1} parent=1 // pred_region
      _
    $region45: #{klgcn_forward.1} parent=1 // pred_fallthru
      _
    %v39 = vld [vmem:[%s4] sm:$0xff]
    %v40 = vld [vmem:[%s4 + $0x8] sm:$0xff]
    %v41 = vld [vmem:[%s5] sm:$0xff]
    %v42 = vld [vmem:[%s5 + $0x8] sm:$0xff]
    %v43 = vld [vmem:[%s0] sm:$0xff]
    %v44 = vld [vmem:[%s0 + $0x8] sm:$0xff]
    %v45 = vld [vmem:[%s0 + $0x10] sm:$0xff]
    %v46 = vld [vmem:[%s0 + $0x18] sm:$0xff]
    %v47 = vld [vmem:[%s8] sm:$0xff]
    %v48 = vld [vmem:[%s8 + $0x8] sm:$0xff]
    %v49 = vld [vmem:[%s8 + $0x10] sm:$0xff]
    %v50 = vld [vmem:[%s8 + $0x18] sm:$0xff]
    %v51 = vld [vmem:[%s8 + $0x20] sm:$0xff]
    %v52 = vld [vmem:[%s8 + $0x28] sm:$0xff]
    %v53 = vld [vmem:[%s8 + $0x30] sm:$0xff]
    %v54 = vld [vmem:[%s8 + $0x38] sm:$0xff]
    %v55 = vld [vmem:[%s8 + $0x40] sm:$0xff]
    %v56 = vld [vmem:[%s8 + $0x48] sm:$0xff]
    %v57 = vld [vmem:[%s8 + $0x50] sm:$0xff]
    %v58 = vld [vmem:[%s8 + $0x58] sm:$0xff]
    %v59 = vld [vmem:[%s8 + $0x60] sm:$0xff]
    %v60 = vld [vmem:[%s8 + $0x68] sm:$0xff]
    %v61 = vld [vmem:[%s8 + $0x70] sm:$0xff]
    %v62 = vld [vmem:[%s8 + $0x78] sm:$0xff]
    %v63 = vld [vmem:[%s8 + $0x80] sm:$0xff]
    %v64 = vld [vmem:[%s8 + $0x88] sm:$0xff]
    %v65 = vld [vmem:[%s8 + $0x90] sm:$0xff]
    %v66 = vld [vmem:[%s8 + $0x98] sm:$0xff]
    %v67 = vld [vmem:[%s8 + $0xa0] sm:$0xff]
    %v68 = vld [vmem:[%s8 + $0xa8] sm:$0xff]
    %v69 = vld [vmem:[%s8 + $0xb0] sm:$0xff]
    %v70 = vld [vmem:[%s8 + $0xb8] sm:$0xff]
    %v71 = vld [vmem:[%s8 + $0xc0] sm:$0xff]
    %v72 = vld [vmem:[%s8 + $0xc8] sm:$0xff]
    %v73 = vld [vmem:[%s8 + $0xd0] sm:$0xff]
    %v74 = vld [vmem:[%s8 + $0xd8] sm:$0xff]
    %v75 = vld [vmem:[%s8 + $0xe0] sm:$0xff]
    %v76 = vld [vmem:[%s8 + $0xe8] sm:$0xff]
    %v77 = vld [vmem:[%s8 + $0xf0] sm:$0xff]
    %v78 = vld [vmem:[%s8 + $0xf8] sm:$0xff]
    %79 = vmatpush.msra.mxu0 %v62
    %80 = vmatpush.msra.mxu0 %v61
    %81 = vmatpush.msra.mxu0 %v60
    %82 = vmatpush.msra.mxu0 %v59
    %83 = vmatpush.msra.mxu0 %v58
    %84 = vmatpush.msra.mxu0 %v57
    %85 = vmatpush.msra.mxu0 %v56
    %86 = vmatpush.msra.mxu0 %v55
    %87 = vmatpush.msra.mxu0 %v54
    %88 = vmatpush.msra.mxu0 %v53
    %89 = vmatpush.msra.mxu0 %v52
    %90 = vmatpush.msra.mxu0 %v51
    %91 = vmatpush.msra.mxu0 %v50
    %92 = vmatpush.msra.mxu0 %v49
    %93 = vmatpush.msra.mxu0 %v48
    %94 = vmatpush.msra.mxu0 %v47
    %95 = vmatmul.f32.gmra.mxu0 %v43
    %v96 = vpop.f32.mrf.mxu0
    %v97 = vadd.f32 0.0, %v96
    %98 = vmatmul.f32.gmra.mxu0 %v45
    %v99 = vpop.f32.mrf.mxu0
    %v100 = vadd.f32 0.0, %v99
    %101 = vdwg.mxu0
    %102 = vmatpush.msra.mxu0 %v78
    %103 = vmatpush.msra.mxu0 %v77
    %104 = vmatpush.msra.mxu0 %v76
    %105 = vmatpush.msra.mxu0 %v75
    %106 = vmatpush.msra.mxu0 %v74
    %107 = vmatpush.msra.mxu0 %v73
    %108 = vmatpush.msra.mxu0 %v72
    %109 = vmatpush.msra.mxu0 %v71
    %110 = vmatpush.msra.mxu0 %v70
    %111 = vmatpush.msra.mxu0 %v69
    %112 = vmatpush.msra.mxu0 %v68
    %113 = vmatpush.msra.mxu0 %v67
    %114 = vmatpush.msra.mxu0 %v66
    %115 = vmatpush.msra.mxu0 %v65
    %116 = vmatpush.msra.mxu0 %v64
    %117 = vmatpush.msra.mxu0 %v63
    %118 = vmatmul.f32.gmra.mxu0 %v44
    %v119 = vpop.f32.mrf.mxu0
    %v120 = vadd.f32 %v97, %v119
    %121 = vmatmul.f32.gmra.mxu0 %v46
    %v122 = vpop.f32.mrf.mxu0
    %v123 = vadd.f32 %v100, %v122
    %124 = vdwg.mxu0
    %v125 = vld [vmem:[%s1] sm:$0xff]
    %v126 = vld [vmem:[%s1 + $0x8] sm:$0xff]
    %v127 = vld [vmem:[%s1 + $0x10] sm:$0xff]
    %v128 = vld [vmem:[%s1 + $0x18] sm:$0xff]
    %129 = vmatpush.msra.mxu0 %v62
    %130 = vmatpush.msra.mxu0 %v61
    %131 = vmatpush.msra.mxu0 %v60
    %132 = vmatpush.msra.mxu0 %v59
    %133 = vmatpush.msra.mxu0 %v58
    %134 = vmatpush.msra.mxu0 %v57
    %135 = vmatpush.msra.mxu0 %v56
    %136 = vmatpush.msra.mxu0 %v55
    %137 = vmatpush.msra.mxu0 %v54
    %138 = vmatpush.msra.mxu0 %v53
    %139 = vmatpush.msra.mxu0 %v52
    %140 = vmatpush.msra.mxu0 %v51
    %141 = vmatpush.msra.mxu0 %v50
    %142 = vmatpush.msra.mxu0 %v49
    %143 = vmatpush.msra.mxu0 %v48
    %144 = vmatpush.msra.mxu0 %v47
    %145 = vmatmul.f32.gmra.mxu0 %v125
    %v146 = vpop.f32.mrf.mxu0
    %v147 = vadd.f32 0.0, %v146
    %148 = vmatmul.f32.gmra.mxu0 %v127
    %v149 = vpop.f32.mrf.mxu0
    %v150 = vadd.f32 0.0, %v149
    %151 = vdwg.mxu0
    %152 = vmatpush.msra.mxu0 %v78
    %153 = vmatpush.msra.mxu0 %v77
    %154 = vmatpush.msra.mxu0 %v76
    %155 = vmatpush.msra.mxu0 %v75
    %156 = vmatpush.msra.mxu0 %v74
    %157 = vmatpush.msra.mxu0 %v73
    %158 = vmatpush.msra.mxu0 %v72
    %159 = vmatpush.msra.mxu0 %v71
    %160 = vmatpush.msra.mxu0 %v70
    %161 = vmatpush.msra.mxu0 %v69
    %162 = vmatpush.msra.mxu0 %v68
    %163 = vmatpush.msra.mxu0 %v67
    %164 = vmatpush.msra.mxu0 %v66
    %165 = vmatpush.msra.mxu0 %v65
    %166 = vmatpush.msra.mxu0 %v64
    %167 = vmatpush.msra.mxu0 %v63
    %168 = vmatmul.f32.gmra.mxu0 %v126
    %v169 = vpop.f32.mrf.mxu0
    %v170 = vadd.f32 %v147, %v169
    %171 = vmatmul.f32.gmra.mxu0 %v128
    %v172 = vpop.f32.mrf.mxu0
    %v173 = vadd.f32 %v150, %v172
    %174 = vdwg.mxu0
    %177 = vrot.lane.b32.xlu0 %v39, 32
    %v178 = vpop.permute.xlu0 %177
    %179 = vrot.lane.b32.xlu0 %v40, 32
    %v180 = vpop.permute.xlu0 %179
    %183 = vrot.lane.b32.xlu0 %v39, 64
    %v184 = vpop.permute.xlu0 %183
    %185 = vrot.lane.b32.xlu0 %v40, 64
    %v186 = vpop.permute.xlu0 %185
    %189 = vrot.lane.b32.xlu0 %v39, 96
    %v190 = vpop.permute.xlu0 %189
    %191 = vrot.lane.b32.xlu0 %v40, 96
    %v192 = vpop.permute.xlu0 %191
    %vm195 = vcmask 261120
    %v196 = vsel %vm195, %v39, %v178
    %v197 = vsel %vm195, %v40, %v180
    %vm198 = vcmask 523264
    %v199 = vsel %vm198, %v196, %v184
    %v200 = vsel %vm198, %v197, %v186
    %vm201 = vcmask 785408
    %v202 = vsel %vm201, %v199, %v190
    %v203 = vsel %vm201, %v200, %v192
    %v204 = vld [vmem:[%s2] sm:$0xff]
    %v205 = vld [vmem:[%s2 + $0x8] sm:$0xff]
    %v206 = vld [vmem:[%s2 + $0x10] sm:$0xff]
    %v207 = vld [vmem:[%s2 + $0x18] sm:$0xff]
    %v208 = vmul.f32 %v204, %v202
    %v209 = vmul.f32 %v205, %v202
    %v210 = vmul.f32 %v206, %v203
    %v211 = vmul.f32 %v207, %v203
    %v212 = vld [vmem:[%s9] sm:$0xff]
    %v213 = vld [vmem:[%s9 + $0x8] sm:$0xff]
    %v214 = vld [vmem:[%s9 + $0x10] sm:$0xff]
    %v215 = vld [vmem:[%s9 + $0x18] sm:$0xff]
    %v216 = vld [vmem:[%s9 + $0x20] sm:$0xff]
    %v217 = vld [vmem:[%s9 + $0x28] sm:$0xff]
    %v218 = vld [vmem:[%s9 + $0x30] sm:$0xff]
    %v219 = vld [vmem:[%s9 + $0x38] sm:$0xff]
    %v220 = vld [vmem:[%s9 + $0x40] sm:$0xff]
    %v221 = vld [vmem:[%s9 + $0x48] sm:$0xff]
    %v222 = vld [vmem:[%s9 + $0x50] sm:$0xff]
    %v223 = vld [vmem:[%s9 + $0x58] sm:$0xff]
    %v224 = vld [vmem:[%s9 + $0x60] sm:$0xff]
    %v225 = vld [vmem:[%s9 + $0x68] sm:$0xff]
    %v226 = vld [vmem:[%s9 + $0x70] sm:$0xff]
    %v227 = vld [vmem:[%s9 + $0x78] sm:$0xff]
    %v228 = vld [vmem:[%s9 + $0x80] sm:$0xff]
    %v229 = vld [vmem:[%s9 + $0x88] sm:$0xff]
    %v230 = vld [vmem:[%s9 + $0x90] sm:$0xff]
    %v231 = vld [vmem:[%s9 + $0x98] sm:$0xff]
    %v232 = vld [vmem:[%s9 + $0xa0] sm:$0xff]
    %v233 = vld [vmem:[%s9 + $0xa8] sm:$0xff]
    %v234 = vld [vmem:[%s9 + $0xb0] sm:$0xff]
    %v235 = vld [vmem:[%s9 + $0xb8] sm:$0xff]
    %v236 = vld [vmem:[%s9 + $0xc0] sm:$0xff]
    %v237 = vld [vmem:[%s9 + $0xc8] sm:$0xff]
    %v238 = vld [vmem:[%s9 + $0xd0] sm:$0xff]
    %v239 = vld [vmem:[%s9 + $0xd8] sm:$0xff]
    %v240 = vld [vmem:[%s9 + $0xe0] sm:$0xff]
    %v241 = vld [vmem:[%s9 + $0xe8] sm:$0xff]
    %v242 = vld [vmem:[%s9 + $0xf0] sm:$0xff]
    %v243 = vld [vmem:[%s9 + $0xf8] sm:$0xff]
    %244 = vmatpush.msra.mxu0 %v227
    %245 = vmatpush.msra.mxu0 %v226
    %246 = vmatpush.msra.mxu0 %v225
    %247 = vmatpush.msra.mxu0 %v224
    %248 = vmatpush.msra.mxu0 %v223
    %249 = vmatpush.msra.mxu0 %v222
    %250 = vmatpush.msra.mxu0 %v221
    %251 = vmatpush.msra.mxu0 %v220
    %252 = vmatpush.msra.mxu0 %v219
    %253 = vmatpush.msra.mxu0 %v218
    %254 = vmatpush.msra.mxu0 %v217
    %255 = vmatpush.msra.mxu0 %v216
    %256 = vmatpush.msra.mxu0 %v215
    %257 = vmatpush.msra.mxu0 %v214
    %258 = vmatpush.msra.mxu0 %v213
    %259 = vmatpush.msra.mxu0 %v212
    %260 = vmatmul.f32.gmra.mxu0 %v208
    %v261 = vpop.f32.mrf.mxu0
    %v262 = vadd.f32 0.0, %v261
    %263 = vmatmul.f32.gmra.mxu0 %v210
    %v264 = vpop.f32.mrf.mxu0
    %v265 = vadd.f32 0.0, %v264
    %266 = vdwg.mxu0
    %267 = vmatpush.msra.mxu0 %v243
    %268 = vmatpush.msra.mxu0 %v242
    %269 = vmatpush.msra.mxu0 %v241
    %270 = vmatpush.msra.mxu0 %v240
    %271 = vmatpush.msra.mxu0 %v239
    %272 = vmatpush.msra.mxu0 %v238
    %273 = vmatpush.msra.mxu0 %v237
    %274 = vmatpush.msra.mxu0 %v236
    %275 = vmatpush.msra.mxu0 %v235
    %276 = vmatpush.msra.mxu0 %v234
    %277 = vmatpush.msra.mxu0 %v233
    %278 = vmatpush.msra.mxu0 %v232
    %279 = vmatpush.msra.mxu0 %v231
    %280 = vmatpush.msra.mxu0 %v230
    %281 = vmatpush.msra.mxu0 %v229
    %282 = vmatpush.msra.mxu0 %v228
    %283 = vmatmul.f32.gmra.mxu0 %v209
    %v284 = vpop.f32.mrf.mxu0
    %v285 = vadd.f32 %v262, %v284
    %286 = vmatmul.f32.gmra.mxu0 %v211
    %v287 = vpop.f32.mrf.mxu0
    %v288 = vadd.f32 %v265, %v287
    %289 = vdwg.mxu0
    %vm290 = vcmask 64512
    %v291 = vsel %vm290, %v285, -inf
    %292 = vmax.xlane.f32.xlu0 %v291
    %v293 = vpop.xlane.xlu0 %292
    %v294 = vsel %vm290, %v288, -inf
    %295 = vmax.xlane.f32.xlu0 %v294
    %v296 = vpop.xlane.xlu0 %295
    %v297 = vsub.f32 %v285, %v293
    %v298 = vsub.f32 %v288, %v296
    %v299 = vmul.f32 %v297, 1.442695
    %v300 = vpow.pop %v299
    %v301 = vmul.f32 %v298, 1.442695
    %v302 = vpow.pop %v301
    %v303 = vsel %vm290, %v300, 0.0
    %304 = vadd.xlane.f32.xlu0 %v303
    %v305 = vpop.xlane.xlu0 %304
    %v306 = vsel %vm290, %v302, 0.0
    %307 = vadd.xlane.f32.xlu0 %v306
    %v308 = vpop.xlane.xlu0 %307
    %v309 = vrcp.pop %v305
    %v310 = vrcp.pop %v308
    %v311 = vmul.f32 %v300, %v309
    %v312 = vmul.f32 %v302, %v310
    %v313 = vld [vmem:[%s10] sm:$0xff]
    %v314 = vld [vmem:[%s10 + $0x8] sm:$0xff]
    %v316 = vsel %vm290, %v311, 0
    %v319 = vsel %vm290, %v312, 0
    %321 = vmatpush.msra.mxu0 0.0
    %322 = vmatpush.msra.mxu0 0.0
    %323 = vmatpush.msra.mxu0 0.0
    %324 = vmatpush.msra.mxu0 0.0
    %325 = vmatpush.msra.mxu0 0.0
    %326 = vmatpush.msra.mxu0 0.0
    %327 = vmatpush.msra.mxu0 0.0
    %328 = vmatpush.msra.mxu0 0.0
    %329 = vmatpush.msra.mxu0 0.0
    %330 = vmatpush.msra.mxu0 0.0
    %331 = vmatpush.msra.mxu0 0.0
    %332 = vmatpush.msra.mxu0 0.0
    %333 = vmatpush.msra.mxu0 0.0
    %334 = vmatpush.msra.mxu0 0.0
    %335 = vmatpush.msra.mxu0 0.0
    %336 = vmatpush.msra.mxu0 %v313
    %337 = vmatmul.f32.gmra.mxu0 %v316
    %v338 = vpop.f32.mrf.mxu0
    %v339 = vadd.f32 0.0, %v338
    %340 = vmatmul.f32.gmra.mxu0 %v319
    %v341 = vpop.f32.mrf.mxu0
    %v342 = vadd.f32 0.0, %v341
    %343 = vdwg.mxu0
    %344 = vmatpush.msra.mxu0 0.0
    %345 = vmatpush.msra.mxu0 0.0
    %346 = vmatpush.msra.mxu0 0.0
    %347 = vmatpush.msra.mxu0 0.0
    %348 = vmatpush.msra.mxu0 0.0
    %349 = vmatpush.msra.mxu0 0.0
    %350 = vmatpush.msra.mxu0 0.0
    %351 = vmatpush.msra.mxu0 0.0
    %352 = vmatpush.msra.mxu0 0.0
    %353 = vmatpush.msra.mxu0 0.0
    %354 = vmatpush.msra.mxu0 0.0
    %355 = vmatpush.msra.mxu0 0.0
    %356 = vmatpush.msra.mxu0 0.0
    %357 = vmatpush.msra.mxu0 0.0
    %358 = vmatpush.msra.mxu0 0.0
    %359 = vmatpush.msra.mxu0 %v314
    %360 = vmatmul.f32.gmra.mxu0 %v316
    %v361 = vpop.f32.mrf.mxu0
    %v362 = vadd.f32 0.0, %v361
    %363 = vmatmul.f32.gmra.mxu0 %v319
    %v364 = vpop.f32.mrf.mxu0
    %v365 = vadd.f32 0.0, %v364
    %366 = vdwg.mxu0
    %v367 = vld [vmem:[%s3] sm:$0xff]
    %v368 = vld [vmem:[%s3 + $0x8] sm:$0xff]
    %v369 = vld [vmem:[%s3 + $0x10] sm:$0xff]
    %v370 = vld [vmem:[%s3 + $0x18] sm:$0xff]
    %v371 = vmul.f32 %v367, %v339
    %v372 = vmul.f32 %v368, %v362
    %v373 = vmul.f32 %v369, %v342
    %v374 = vmul.f32 %v370, %v365
    %375 = vmatpush.msra.mxu0 %v62
    %376 = vmatpush.msra.mxu0 %v61
    %377 = vmatpush.msra.mxu0 %v60
    %378 = vmatpush.msra.mxu0 %v59
    %379 = vmatpush.msra.mxu0 %v58
    %380 = vmatpush.msra.mxu0 %v57
    %381 = vmatpush.msra.mxu0 %v56
    %382 = vmatpush.msra.mxu0 %v55
    %383 = vmatpush.msra.mxu0 %v54
    %384 = vmatpush.msra.mxu0 %v53
    %385 = vmatpush.msra.mxu0 %v52
    %386 = vmatpush.msra.mxu0 %v51
    %387 = vmatpush.msra.mxu0 %v50
    %388 = vmatpush.msra.mxu0 %v49
    %389 = vmatpush.msra.mxu0 %v48
    %390 = vmatpush.msra.mxu0 %v47
    %391 = vmatmul.f32.gmra.mxu0 %v371
    %v392 = vpop.f32.mrf.mxu0
    %v393 = vadd.f32 0.0, %v392
    %394 = vmatmul.f32.gmra.mxu0 %v373
    %v395 = vpop.f32.mrf.mxu0
    %v396 = vadd.f32 0.0, %v395
    %397 = vdwg.mxu0
    %398 = vmatpush.msra.mxu0 %v78
    %399 = vmatpush.msra.mxu0 %v77
    %400 = vmatpush.msra.mxu0 %v76
    %401 = vmatpush.msra.mxu0 %v75
    %402 = vmatpush.msra.mxu0 %v74
    %403 = vmatpush.msra.mxu0 %v73
    %404 = vmatpush.msra.mxu0 %v72
    %405 = vmatpush.msra.mxu0 %v71
    %406 = vmatpush.msra.mxu0 %v70
    %407 = vmatpush.msra.mxu0 %v69
    %408 = vmatpush.msra.mxu0 %v68
    %409 = vmatpush.msra.mxu0 %v67
    %410 = vmatpush.msra.mxu0 %v66
    %411 = vmatpush.msra.mxu0 %v65
    %412 = vmatpush.msra.mxu0 %v64
    %413 = vmatpush.msra.mxu0 %v63
    %414 = vmatmul.f32.gmra.mxu0 %v372
    %v415 = vpop.f32.mrf.mxu0
    %v416 = vadd.f32 %v393, %v415
    %417 = vmatmul.f32.gmra.mxu0 %v374
    %v418 = vpop.f32.mrf.mxu0
    %v419 = vadd.f32 %v396, %v418
    %420 = vdwg.mxu0
    %v421 = vadd.f32 %v41, %v416
    %v422 = vadd.f32 %v42, %v419
    %v423 = vld [vmem:[%s6] sm:$0xff]
    %v424 = vld [vmem:[%s6 + $0x8] sm:$0xff]
    %v425 = vld [vmem:[%s6 + $0x10] sm:$0xff]
    %v426 = vld [vmem:[%s6 + $0x18] sm:$0xff]
    %v427 = vld [vmem:[%s7] sm:$0x1]
    %v429 = vperm.slane %v427, 0
    %v432 = vsel %vm195, %v421, 0
    %v435 = vsel %vm195, %v422, 0
    %437 = vmatpush.msra.mxu0 0.0
    %438 = vmatpush.msra.mxu0 0.0
    %439 = vmatpush.msra.mxu0 0.0
    %440 = vmatpush.msra.mxu0 0.0
    %441 = vmatpush.msra.mxu0 0.0
    %442 = vmatpush.msra.mxu0 0.0
    %443 = vmatpush.msra.mxu0 0.0
    %444 = vmatpush.msra.mxu0 0.0
    %445 = vmatpush.msra.mxu0 0.0
    %446 = vmatpush.msra.mxu0 0.0
    %447 = vmatpush.msra.mxu0 0.0
    %448 = vmatpush.msra.mxu0 0.0
    %449 = vmatpush.msra.mxu0 %v426
    %450 = vmatpush.msra.mxu0 %v425
    %451 = vmatpush.msra.mxu0 %v424
    %452 = vmatpush.msra.mxu0 %v423
    %453 = vmatmul.f32.gmra.mxu0 %v432
    %v454 = vpop.f32.mrf.mxu0
    %v455 = vadd.f32 %v429, %v454
    %456 = vmatmul.f32.gmra.mxu0 %v435
    %v457 = vpop.f32.mrf.mxu0
    %v458 = vadd.f32 %v429, %v457
    %459 = vdwg.mxu0
    %v460 = vtanh.pop %v455
    %v461 = vtanh.pop %v458
    %v462 = vmul.f32 %v120, 0.125
    %v463 = vmul.f32 %v123, 0.125
    %v464 = vadd.f32 %v462, %v39
    %v465 = vadd.f32 %v463, %v40
    %v466 = vmul.f32 %v170, 0.125
    %v467 = vmul.f32 %v173, 0.125
    %v468 = vadd.f32 %v466, %v460
    %v469 = vadd.f32 %v467, %v461
    %v470 = vmul.f32 %v464, %v468
    %v471 = vmul.f32 %v465, %v469
    %v472 = vsel %vm195, %v470, 0.0
    %473 = vadd.xlane.f32.xlu0 %v472
    %v474 = vpop.xlane.xlu0 %473
    %v475 = vsel %vm195, %v471, 0.0
    %476 = vadd.xlane.f32.xlu0 %v475
    %v477 = vpop.xlane.xlu0 %476
    %v478 = vmul.f32 %v474, 0.25
    %v479 = vmul.f32 %v477, 0.25
    %v480 = vxor.u32 %v478, 2147483648
    %v481 = vxor.u32 %v479, 2147483648
    %v482 = vmul.f32 %v480, 1.442695
    %v483 = vpow.pop %v482
    %v484 = vmul.f32 %v481, 1.442695
    %v485 = vpow.pop %v484
    %v486 = vadd.f32 %v483, 1.0
    %v487 = vadd.f32 %v485, 1.0
    %v488 = vrcp.pop %v486
    %v489 = vmul.f32 %v486, %v488
    %v490 = vsub.f32 1.0, %v489
    %v491 = vmul.f32 %v488, %v490
    %v492 = vadd.f32 %v488, %v491
    %vm493 = vweird.f32 %v486
    %vm494 = vweird.f32 %v488
    %vm495 = vmor %vm493, %vm494
    %v496 = vsel %vm495, %v488, %v492
    %v497 = vand.u32 2147483647, %v486
    %vm498 = vcmp.eq.f32.partialorder %v497, 8.507059e+37
    %v499 = vand.u32 %v486, 2147483648
    %v500 = vor.u32 1.1754944e-38, %v499
    %v501 = vsel %vm498, %v500, %v496
    %v502 = vmul.f32 1.0, %v501
    %v503 = vrcp.pop %v487
    %v504 = vmul.f32 %v487, %v503
    %v505 = vsub.f32 1.0, %v504
    %v506 = vmul.f32 %v503, %v505
    %v507 = vadd.f32 %v503, %v506
    %vm508 = vweird.f32 %v487
    %vm509 = vweird.f32 %v503
    %vm510 = vmor %vm508, %vm509
    %v511 = vsel %vm510, %v503, %v507
    %v512 = vand.u32 2147483647, %v487
    %vm513 = vcmp.eq.f32.partialorder %v512, 8.507059e+37
    %v514 = vand.u32 %v487, 2147483648
    %v515 = vor.u32 1.1754944e-38, %v514
    %v516 = vsel %vm513, %v515, %v511
    %v517 = vmul.f32 1.0, %v516
    %v520 = vlaneseq
    %v521 = vand.u32 %v520, 127
    %v522 = vperm.slane %v502, %v521
    %v523 = vadd.s32 %v521, 4294967288
    %v524 = vperm.slane %v517, %v523
    %vm525 = vcmask 130112
    %v526 = vsel %vm525, %v524, %v522
    %vm528 = vcmask 122880
    %529 = vst.msk [vmem:[#allocation2] sm:$0x1] %vm528, %v526
    // Predicated region
    $region46: #{klgcn_forward.1} parent=1 // pred_check
      _
    $region47: #{klgcn_forward.1} parent=1 // pred_check_branch
      %531 = sbr.rel (0) target = $region49
    $region48: #{klgcn_forward.1} parent=1 // pred_region
      %533 = vsyncadd [#allocation3], 0
      %s535 = sshll.u32 [#allocation2], 4
      %s536 = int_to_ptr.vmem [resolvable:$true] %s535
      %s537 = sshll.u32 %s11, 4
      %s538 = int_to_ptr.hbm [resolvable:$true] %s537
      %540 = dma.vmem_to_hbm [thread:$0]  %s536, 16, %s538, [#allocation3]
    $region49: #{klgcn_forward.1} parent=1 // pred_fallthru
      _
    // Predicated region
    $region50: #{klgcn_forward.1} parent=1 // pred_check
      _
    $region51: #{klgcn_forward.1} parent=1 // pred_check_branch
      %542 = sbr.rel (0) target = $region53
    $region52: #{klgcn_forward.1} parent=1 // pred_region
      %544 = dma.done [#allocation3], 16
    $region53: #{klgcn_forward.1} parent=1 // pred_fallthru
      _
    %545 = vsyncpa [#allocation3], 1

</llo_original>
